<compile_context>
chip_gen: v6e
topology: v6e:2x2x1
jax: 0.10.0
libtpu: 0.0.40
codegen_flags: <defaults>
</compile_context>

<pallas_src>
import jax
import jax.numpy as jnp
from jax.experimental import pallas as pl
from jax.experimental.pallas import tpu as pltpu

LANE = 128
SUBLANE = 8


def _round_up(x, m):
    return (x + m - 1) // m * m


def _num_tensorcores_per_chip():
    """Best-effort detection of TensorCores per chip (2 on v7x, else 1)."""
    try:
        kind = jax.devices()[0].device_kind.lower()
        if "v7" in kind:
            return 2
    except Exception:
        pass
    return 1


def critic_kernel(alphas_ref, x_ref, w1_ref, b1_ref, w2_ref, b2_ref,
                  w3_ref, b3_ref, o_ref):
    """One batch tile of the 3-layer MLP. bf16 matmul operands, f32 accumulation."""
    x = x_ref[...].astype(jnp.bfloat16)  # cast in-kernel (tile is tiny)
    a1 = alphas_ref[0]                   # scalar PReLU slopes from SMEM
    a2 = alphas_ref[1]

    # ---- Linear 1 + (Dropout = identity) + PReLU ----
    h1 = jnp.dot(x, w1_ref[...], preferred_element_type=jnp.float32) + b1_ref[...]
    h1 = jnp.where(h1 >= 0.0, h1, a1 * h1)          # f32 elementwise (v5e-safe)

    # ---- Linear 2 + (Dropout = identity) + PReLU ----
    h2 = jnp.dot(h1.astype(jnp.bfloat16), w2_ref[...],
                 preferred_element_type=jnp.float32) + b2_ref[...]
    h2 = jnp.where(h2 >= 0.0, h2, a2 * h2)

    # ---- Linear 3 (value head; lane-dense padded matmul, narrow store) ----
    out = jnp.dot(h2.astype(jnp.bfloat16), w3_ref[...],
                  preferred_element_type=jnp.float32) + b3_ref[...]
    o_ref[...] = out[:, :o_ref.shape[-1]].astype(o_ref.dtype)


def critic_forward(x, params, *, tile_m=512):
    """x: [B, input_size] float32. params: dict from init_params (weights [in,out])."""
    B, in_f = x.shape
    hid_pad = params["w1"].shape[1]           # lane-padded hidden width (mult of 128)
    out_pad = params["w3"].shape[1]           # lane-padded head width for the matmul
    out_size = int(params["out_size"])

    # One grid step per TensorCore (so v7x megacore splits the batch), capped at
    # tile_m rows/step for large batches; rows rounded to the sublane granule.
    n_cores = _num_tensorcores_per_chip()
    rows_per_step = -(-B // n_cores)
    TM = min(tile_m, _round_up(rows_per_step, SUBLANE))
    n_steps = -(-B // TM)
    B_pad = n_steps * TM

    if B_pad != B:
        # Tiny tail pad, only materialized when B is not a multiple of the tile.
        x = jnp.pad(x, ((0, B_pad - B), (0, 0)))

    out = pl.pallas_call(
        critic_kernel,
        out_shape=jax.ShapeDtypeStruct((B_pad, out_size), jnp.float32),
        grid=(n_steps,),
        in_specs=[
            pl.BlockSpec(memory_space=pltpu.MemorySpace.SMEM),   # alphas (2,)
            pl.BlockSpec((TM, in_f), lambda i: (i, 0)),          # x tile (pipelined)
            pl.BlockSpec((in_f, hid_pad), lambda i: (0, 0)),     # w1 (resident)
            pl.BlockSpec((1, hid_pad), lambda i: (0, 0)),        # b1
            pl.BlockSpec((hid_pad, hid_pad), lambda i: (0, 0)),  # w2 (resident)
            pl.BlockSpec((1, hid_pad), lambda i: (0, 0)),        # b2
            pl.BlockSpec((hid_pad, out_pad), lambda i: (0, 0)),  # w3 (padded, resident)
            pl.BlockSpec((1, out_pad), lambda i: (0, 0)),        # b3 (padded)
        ],
        out_specs=pl.BlockSpec((TM, out_size), lambda i: (i, 0)),  # narrow store
        compiler_params=pltpu.CompilerParams(
            dimension_semantics=("parallel",)),   # megacore-shardable batch axis (v7x)
    )(params["alphas"], x, params["w1"], params["b1"],
      params["w2"], params["b2"], params["w3"], params["b3"])

    return out[:B]


def init_params(key, input_size, hidden_size, output_size):
    """Mimics nn.Linear init (uniform +-1/sqrt(fan_in)) and nn.PReLU alpha=0.25.
    Weights stored as [in, out]; matmul weights cast to bf16; hidden width and
    value head are zero-padded to multiples of 128 for lane density."""
    ks = jax.random.split(key, 6)

    def linear(kw, kb, fan_in, fan_out):
        bound = 1.0 / float(fan_in) ** 0.5
        w = jax.random.uniform(kw, (fan_in, fan_out), jnp.float32, -bound, bound)
        b = jax.random.uniform(kb, (1, fan_out), jnp.float32, -bound, bound)
        return w, b

    w1, b1 = linear(ks[0], ks[1], input_size, hidden_size)
    w2, b2 = linear(ks[2], ks[3], hidden_size, hidden_size)
    w3, b3 = linear(ks[4], ks[5], hidden_size, output_size)

    hid_pad = _round_up(max(hidden_size, LANE), LANE)
    out_pad = _round_up(max(output_size, LANE), LANE)

    w1p = jnp.zeros((input_size, hid_pad), jnp.float32).at[:, :hidden_size].set(w1)
    b1p = jnp.zeros((1, hid_pad), jnp.float32).at[:, :hidden_size].set(b1)
    w2p = jnp.zeros((hid_pad, hid_pad), jnp.float32).at[:hidden_size, :hidden_size].set(w2)
    b2p = jnp.zeros((1, hid_pad), jnp.float32).at[:, :hidden_size].set(b2)
    w3p = jnp.zeros((hid_pad, out_pad), jnp.float32).at[:hidden_size, :output_size].set(w3)
    b3p = jnp.zeros((1, out_pad), jnp.float32).at[:, :output_size].set(b3)

    return {
        "w1": w1p.astype(jnp.bfloat16), "b1": b1p,
        "w2": w2p.astype(jnp.bfloat16), "b2": b2p,
        "w3": w3p.astype(jnp.bfloat16), "b3": b3p,
        "alphas": jnp.full((2,), 0.25, jnp.float32),   # PReLU slopes (layer 1, layer 2)
        "out_size": output_size,
    }


def critic_reference(x, p):
    """Pure-JAX reference with identical bf16 operand rounding (eval-mode dropout)."""
    def prelu(h, a):
        return jnp.where(h >= 0.0, h, a * h)
    out_size = int(p["out_size"])
    h = prelu(jnp.dot(x.astype(jnp.bfloat16), p["w1"],
                      preferred_element_type=jnp.float32) + p["b1"], p["alphas"][0])
    h = prelu(jnp.dot(h.astype(jnp.bfloat16), p["w2"],
                      preferred_element_type=jnp.float32) + p["b2"], p["alphas"][1])
    out = jnp.dot(h.astype(jnp.bfloat16), p["w3"],
                  preferred_element_type=jnp.float32) + p["b3"]
    return out[:, :out_size]


if __name__ == "__main__":
    input_size, hidden_size, output_size = 32, 32, 1
    batch = 200   # exercises sublane rounding / possible 2-step megacore split

    key = jax.random.PRNGKey(0)
    kx, kp = jax.random.split(key)
    x = jax.random.normal(kx, (batch, input_size), jnp.float32)
    params = init_params(kp, input_size, hidden_size, output_size)

    out = critic_forward(x, params)
    out = jax.block_until_ready(out)

    ref = critic_reference(x, params)
    assert out.shape == (batch, output_size), out.shape
    max_err = float(jnp.max(jnp.abs(out - ref)))
    assert jnp.allclose(out, ref, atol=5e-3, rtol=5e-3), (
        "mismatch vs reference: max abs diff = %g" % max_err)

    print("KERNEL_OK")
</pallas_src>

<mosaic_0001>
module attributes {stable_mosaic.version = 11 : i64} {
  func.func @critic_kernel(%arg0: i32, %arg1: memref<2xf32, #tpu.memory_space<smem>>, %arg2: memref<200x32xf32, #tpu.memory_space<vmem>>, %arg3: memref<32x128xbf16, #tpu.memory_space<vmem>>, %arg4: memref<1x128xf32, #tpu.memory_space<vmem>>, %arg5: memref<128x128xbf16, #tpu.memory_space<vmem>>, %arg6: memref<1x128xf32, #tpu.memory_space<vmem>>, %arg7: memref<128x128xbf16, #tpu.memory_space<vmem>>, %arg8: memref<1x128xf32, #tpu.memory_space<vmem>>, %arg9: memref<200x1xf32, #tpu.memory_space<vmem>>) attributes {dimension_semantics = [#tpu.dimension_semantics<parallel>], iteration_bounds = array<i64: 1>, scalar_prefetch = 0 : i64, scratch_operands = 0 : i64, tpu.core_type = #tpu.core_type<tc>, window_params = [{transform_indices = @transform_0, window_bounds = array<i64: 2>}, {transform_indices = @transform_1, window_bounds = array<i64: 200, 32>}, {pipeline_mode = #tpu.pipeline_mode<synchronous>, transform_indices = @transform_2, window_bounds = array<i64: 32, 128>}, {pipeline_mode = #tpu.pipeline_mode<synchronous>, transform_indices = @transform_3, window_bounds = array<i64: 1, 128>}, {pipeline_mode = #tpu.pipeline_mode<synchronous>, transform_indices = @transform_4, window_bounds = array<i64: 128, 128>}, {pipeline_mode = #tpu.pipeline_mode<synchronous>, transform_indices = @transform_5, window_bounds = array<i64: 1, 128>}, {pipeline_mode = #tpu.pipeline_mode<synchronous>, transform_indices = @transform_6, window_bounds = array<i64: 128, 128>}, {pipeline_mode = #tpu.pipeline_mode<synchronous>, transform_indices = @transform_7, window_bounds = array<i64: 1, 128>}, {transform_indices = @transform_8, window_bounds = array<i64: 200, 1>}]} {
    %c0 = arith.constant 0 : index
    %c0_0 = arith.constant 0 : index
    %0 = vector.load %arg2[%c0, %c0_0] : memref<200x32xf32, #tpu.memory_space<vmem>>, vector<200x32xf32>
    %1 = arith.truncf %0 : vector<200x32xf32> to vector<200x32xbf16>
    %c0_1 = arith.constant 0 : index
    %2 = memref.load %arg1[%c0_1] : memref<2xf32, #tpu.memory_space<smem>>
    %c1 = arith.constant 1 : index
    %3 = memref.load %arg1[%c1] : memref<2xf32, #tpu.memory_space<smem>>
    %c0_2 = arith.constant 0 : index
    %c0_3 = arith.constant 0 : index
    %4 = vector.load %arg3[%c0_2, %c0_3] : memref<32x128xbf16, #tpu.memory_space<vmem>>, vector<32x128xbf16>
    %cst = arith.constant dense<0.000000e+00> : vector<200x128xf32>
    %5 = tpu.matmul %1, %4, %cst {dimension_numbers = #tpu.dot_dimension_numbers<[1], [0], [0], [1], [0, 0, 1, 1], [], []>} : vector<200x32xbf16>, vector<32x128xbf16>, vector<200x128xf32> -> vector<200x128xf32>
    %c0_4 = arith.constant 0 : index
    %c0_5 = arith.constant 0 : index
    %6 = vector.load %arg4[%c0_4, %c0_5] : memref<1x128xf32, #tpu.memory_space<vmem>>, vector<1x128xf32>
    %7 = vector.broadcast %6 : vector<1x128xf32> to vector<200x128xf32>
    %8 = arith.addf %5, %7 : vector<200x128xf32>
    %cst_6 = arith.constant 0.000000e+00 : f32
    %9 = vector.broadcast %cst_6 : f32 to vector<200x128xf32>
    %10 = arith.cmpf oge, %8, %9 : vector<200x128xf32>
    %11 = vector.broadcast %2 : f32 to vector<200x128xf32>
    %12 = arith.mulf %11, %8 : vector<200x128xf32>
    %13 = arith.select %10, %8, %12 : vector<200x128xi1>, vector<200x128xf32>
    %14 = arith.truncf %13 : vector<200x128xf32> to vector<200x128xbf16>
    %c0_7 = arith.constant 0 : index
    %c0_8 = arith.constant 0 : index
    %15 = vector.load %arg5[%c0_7, %c0_8] : memref<128x128xbf16, #tpu.memory_space<vmem>>, vector<128x128xbf16>
    %cst_9 = arith.constant dense<0.000000e+00> : vector<200x128xf32>
    %16 = tpu.matmul %14, %15, %cst_9 {dimension_numbers = #tpu.dot_dimension_numbers<[1], [0], [0], [1], [0, 0, 1, 1], [], []>} : vector<200x128xbf16>, vector<128x128xbf16>, vector<200x128xf32> -> vector<200x128xf32>
    %c0_10 = arith.constant 0 : index
    %c0_11 = arith.constant 0 : index
    %17 = vector.load %arg6[%c0_10, %c0_11] : memref<1x128xf32, #tpu.memory_space<vmem>>, vector<1x128xf32>
    %18 = vector.broadcast %17 : vector<1x128xf32> to vector<200x128xf32>
    %19 = arith.addf %16, %18 : vector<200x128xf32>
    %cst_12 = arith.constant 0.000000e+00 : f32
    %20 = vector.broadcast %cst_12 : f32 to vector<200x128xf32>
    %21 = arith.cmpf oge, %19, %20 : vector<200x128xf32>
    %22 = vector.broadcast %3 : f32 to vector<200x128xf32>
    %23 = arith.mulf %22, %19 : vector<200x128xf32>
    %24 = arith.select %21, %19, %23 : vector<200x128xi1>, vector<200x128xf32>
    %25 = arith.truncf %24 : vector<200x128xf32> to vector<200x128xbf16>
    %c0_13 = arith.constant 0 : index
    %c0_14 = arith.constant 0 : index
    %26 = vector.load %arg7[%c0_13, %c0_14] : memref<128x128xbf16, #tpu.memory_space<vmem>>, vector<128x128xbf16>
    %cst_15 = arith.constant dense<0.000000e+00> : vector<200x128xf32>
    %27 = tpu.matmul %25, %26, %cst_15 {dimension_numbers = #tpu.dot_dimension_numbers<[1], [0], [0], [1], [0, 0, 1, 1], [], []>} : vector<200x128xbf16>, vector<128x128xbf16>, vector<200x128xf32> -> vector<200x128xf32>
    %c0_16 = arith.constant 0 : index
    %c0_17 = arith.constant 0 : index
    %28 = vector.load %arg8[%c0_16, %c0_17] : memref<1x128xf32, #tpu.memory_space<vmem>>, vector<1x128xf32>
    %29 = vector.broadcast %28 : vector<1x128xf32> to vector<200x128xf32>
    %30 = arith.addf %27, %29 : vector<200x128xf32>
    %31 = vector.extract_strided_slice %30 {offsets = [0, 0], sizes = [200, 1], strides = [1, 1]} : vector<200x128xf32> to vector<200x1xf32>
    %c0_18 = arith.constant 0 : index
    %c0_19 = arith.constant 0 : index
    %32 = vector.load %arg9[%c0_18, %c0_19] : memref<200x1xf32, #tpu.memory_space<vmem>>, vector<200x1xf32>
    tpu.vector_store %arg9[%c0_18, %c0_19], %31 {strides = array<i32>} : memref<200x1xf32, #tpu.memory_space<vmem>>, vector<200x1xf32>,
    return
  }
  func.func @transform_0(%arg0: i32) -> i32 {
    %c0_i32 = arith.constant 0 : i32
    %c0_i32_0 = arith.constant 0 : i32
    return %c0_i32 : i32
  }
  func.func @transform_1(%arg0: i32) -> (i32, i32) {
    %c0_i32 = arith.constant 0 : i32
    %c0_i32_0 = arith.constant 0 : i32
    return %arg0, %c0_i32 : i32, i32
  }
  func.func @transform_2(%arg0: i32) -> (i32, i32) {
    %c0_i32 = arith.constant 0 : i32
    %c0_i32_0 = arith.constant 0 : i32
    %c0_i32_1 = arith.constant 0 : i32
    return %c0_i32, %c0_i32_0 : i32, i32
  }
  func.func @transform_3(%arg0: i32) -> (i32, i32) {
    %c0_i32 = arith.constant 0 : i32
    %c0_i32_0 = arith.constant 0 : i32
    %c0_i32_1 = arith.constant 0 : i32
    return %c0_i32, %c0_i32_0 : i32, i32
  }
  func.func @transform_4(%arg0: i32) -> (i32, i32) {
    %c0_i32 = arith.constant 0 : i32
    %c0_i32_0 = arith.constant 0 : i32
    %c0_i32_1 = arith.constant 0 : i32
    return %c0_i32, %c0_i32_0 : i32, i32
  }
  func.func @transform_5(%arg0: i32) -> (i32, i32) {
    %c0_i32 = arith.constant 0 : i32
    %c0_i32_0 = arith.constant 0 : i32
    %c0_i32_1 = arith.constant 0 : i32
    return %c0_i32, %c0_i32_0 : i32, i32
  }
  func.func @transform_6(%arg0: i32) -> (i32, i32) {
    %c0_i32 = arith.constant 0 : i32
    %c0_i32_0 = arith.constant 0 : i32
    %c0_i32_1 = arith.constant 0 : i32
    return %c0_i32, %c0_i32_0 : i32, i32
  }
  func.func @transform_7(%arg0: i32) -> (i32, i32) {
    %c0_i32 = arith.constant 0 : i32
    %c0_i32_0 = arith.constant 0 : i32
    %c0_i32_1 = arith.constant 0 : i32
    return %c0_i32, %c0_i32_0 : i32, i32
  }
  func.func @transform_8(%arg0: i32) -> (i32, i32) {
    %c0_i32 = arith.constant 0 : i32
    %c0_i32_0 = arith.constant 0 : i32
    return %arg0, %c0_i32 : i32, i32
  }
}

</mosaic_0001>

<llo_original>
// kernel: tpu_custom_call.1
$region0: #{tpu_custom_call.1}
  #allocation0 [shape = 'u32[]', space=smem, size = 0x4, offset = 0x4, fixed_abs, tag = 'smem constant byte address 0x4 - core index']
  #allocation1 [shape = 'u32[144,128]{1,0:T(1,128)}', space=vmem, size = 0x12000, scoped, tag = 'internal scratch']
  %s0 = inlined_call_operand.vmem [shape: f32[2], index: 0, kind: input, shape index: {}]
  %s1 = inlined_call_operand.vmem [shape: f32[200,32], index: 1, kind: input, shape index: {}]
  %s2 = inlined_call_operand.vmem [shape: bf16[32,128], index: 2, kind: input, shape index: {}]
  %s3 = inlined_call_operand.vmem [shape: f32[1,128], index: 3, kind: input, shape index: {}]
  %s4 = inlined_call_operand.vmem [shape: bf16[128,128], index: 4, kind: input, shape index: {}]
  %s5 = inlined_call_operand.vmem [shape: f32[1,128], index: 5, kind: input, shape index: {}]
  %s6 = inlined_call_operand.vmem [shape: bf16[128,128], index: 6, kind: input, shape index: {}]
  %s7 = inlined_call_operand.vmem [shape: f32[1,128], index: 7, kind: input, shape index: {}]
  %s8 = inlined_call_operand.vmem [shape: f32[200,1], index: 8, kind: output, shape index: {}]
  %s9 = sld [smem:[#allocation0]]
  $region46: #{tpu_custom_call.1} parent=0
    _
  %s11 = ssub.s32 1, %s9
  %s12 = scalar_select 0, %s11, %s9
  $region1: #{tpu_custom_call.1} parent=0
    #allocation2 [shape = 'u8[512]{0}', space=smem, size = 0x200, scoped, tag = 'input window, operand 0, single buffered']
    #allocation3 [shape = 's32[1]{0}', space=sflag, size = 0x4, scoped, tag = 'scoped memory for tpu_custom_call.1']
    %13 = vsyncpa [#allocation3], 0
    // Predicated region
    $region2: #{tpu_custom_call.1} parent=1 // pred_check
      _
    $region3: #{tpu_custom_call.1} parent=1 // pred_check_branch
      %15 = sbr.rel (0) target = $region5
    $region4: #{tpu_custom_call.1} parent=1 // pred_region
      %s17 = ssub.s32 16, 16
      %18 = vsyncadd [#allocation3], %s17
      %s20 = sshll.u32 %s0, 4
      %s21 = int_to_ptr.vmem [resolvable:$true] %s20
      %23 = dma.vmem_to_smem %s21, 16, [#allocation2], [#allocation3]
    $region5: #{tpu_custom_call.1} parent=1 // pred_fallthru
      _
    // Predicated region
    $region6: #{tpu_custom_call.1} parent=1 // pred_check
      _
    $region7: #{tpu_custom_call.1} parent=1 // pred_check_branch
      %25 = sbr.rel (0) target = $region9
    $region8: #{tpu_custom_call.1} parent=1 // pred_region
      _
    $region9: #{tpu_custom_call.1} parent=1 // pred_fallthru
      _
    // Predicated region
    $region10: #{tpu_custom_call.1} parent=1 // pred_check
      _
    $region11: #{tpu_custom_call.1} parent=1 // pred_check_branch
      %27 = sbr.rel (0) target = $region13
    $region12: #{tpu_custom_call.1} parent=1 // pred_region
      _
    $region13: #{tpu_custom_call.1} parent=1 // pred_fallthru
      _
    // Predicated region
    $region14: #{tpu_custom_call.1} parent=1 // pred_check
      _
    $region15: #{tpu_custom_call.1} parent=1 // pred_check_branch
      %29 = sbr.rel (0) target = $region17
    $region16: #{tpu_custom_call.1} parent=1 // pred_region
      _
    $region17: #{tpu_custom_call.1} parent=1 // pred_fallthru
      _
    // Predicated region
    $region18: #{tpu_custom_call.1} parent=1 // pred_check
      _
    $region19: #{tpu_custom_call.1} parent=1 // pred_check_branch
      %31 = sbr.rel (0) target = $region21
    $region20: #{tpu_custom_call.1} parent=1 // pred_region
      _
    $region21: #{tpu_custom_call.1} parent=1 // pred_fallthru
      _
    // Predicated region
    $region22: #{tpu_custom_call.1} parent=1 // pred_check
      _
    $region23: #{tpu_custom_call.1} parent=1 // pred_check_branch
      %33 = sbr.rel (0) target = $region25
    $region24: #{tpu_custom_call.1} parent=1 // pred_region
      _
    $region25: #{tpu_custom_call.1} parent=1 // pred_fallthru
      _
    // Predicated region
    $region26: #{tpu_custom_call.1} parent=1 // pred_check
      _
    $region27: #{tpu_custom_call.1} parent=1 // pred_check_branch
      %35 = sbr.rel (0) target = $region29
    $region28: #{tpu_custom_call.1} parent=1 // pred_region
      _
    $region29: #{tpu_custom_call.1} parent=1 // pred_fallthru
      _
    // Predicated region
    $region30: #{tpu_custom_call.1} parent=1 // pred_check
      _
    $region31: #{tpu_custom_call.1} parent=1 // pred_check_branch
      %37 = sbr.rel (0) target = $region33
    $region32: #{tpu_custom_call.1} parent=1 // pred_region
      _
    $region33: #{tpu_custom_call.1} parent=1 // pred_fallthru
      _
    // Predicated region
    $region34: #{tpu_custom_call.1} parent=1 // pred_check
      _
    $region35: #{tpu_custom_call.1} parent=1 // pred_check_branch
      %39 = sbr.rel (0) target = $region37
    $region36: #{tpu_custom_call.1} parent=1 // pred_region
      %40 = dma.done [#allocation3], 16
    $region37: #{tpu_custom_call.1} parent=1 // pred_fallthru
      _
    %41 = sfence
    %v43 = vld [vmem:[%s1] sm:$0xff]
    %v44 = vld [vmem:[%s1 + $0x8] sm:$0xff]
    %v45 = vld [vmem:[%s1 + $0x10] sm:$0xff]
    %v46 = vld [vmem:[%s1 + $0x18] sm:$0xff]
    %v47 = vld [vmem:[%s1 + $0x20] sm:$0xff]
    %v48 = vld [vmem:[%s1 + $0x28] sm:$0xff]
    %v49 = vld [vmem:[%s1 + $0x30] sm:$0xff]
    %v50 = vld [vmem:[%s1 + $0x38] sm:$0xff]
    %v51 = vld [vmem:[%s1 + $0x40] sm:$0xff]
    %v52 = vld [vmem:[%s1 + $0x48] sm:$0xff]
    %v53 = vld [vmem:[%s1 + $0x50] sm:$0xff]
    %v54 = vld [vmem:[%s1 + $0x58] sm:$0xff]
    %v55 = vld [vmem:[%s1 + $0x60] sm:$0xff]
    %v56 = vld [vmem:[%s1 + $0x68] sm:$0xff]
    %v57 = vld [vmem:[%s1 + $0x70] sm:$0xff]
    %v58 = vld [vmem:[%s1 + $0x78] sm:$0xff]
    %v59 = vld [vmem:[%s1 + $0x80] sm:$0xff]
    %v60 = vld [vmem:[%s1 + $0x88] sm:$0xff]
    %v61 = vld [vmem:[%s1 + $0x90] sm:$0xff]
    %v62 = vld [vmem:[%s1 + $0x98] sm:$0xff]
    %v63 = vld [vmem:[%s1 + $0xa0] sm:$0xff]
    %v64 = vld [vmem:[%s1 + $0xa8] sm:$0xff]
    %v65 = vld [vmem:[%s1 + $0xb0] sm:$0xff]
    %v66 = vld [vmem:[%s1 + $0xb8] sm:$0xff]
    %v67 = vld [vmem:[%s1 + $0xc0] sm:$0xff]
    %v68 = vpack.c.bf16 %v44, %v43
    %v69 = vpack.c.bf16 %v46, %v45
    %v70 = vpack.c.bf16 %v48, %v47
    %v71 = vpack.c.bf16 %v50, %v49
    %v72 = vpack.c.bf16 %v52, %v51
    %v73 = vpack.c.bf16 %v54, %v53
    %v74 = vpack.c.bf16 %v56, %v55
    %v75 = vpack.c.bf16 %v58, %v57
    %v76 = vpack.c.bf16 %v60, %v59
    %v77 = vpack.c.bf16 %v62, %v61
    %v78 = vpack.c.bf16 %v64, %v63
    %v79 = vpack.c.bf16 %v66, %v65
    %v80 = vpack.c.bf16 %v67, %v67
    %s81 = sld [smem:[#allocation2]]
    %s82 = sld [smem:[#allocation2 + $0x1]]
    %v83 = vld [vmem:[%s2] sm:$0xf]
    %v84 = vld [vmem:[%s2 + $0x4] sm:$0xf]
    %v85 = vld [vmem:[%s2 + $0x8] sm:$0xf]
    %v86 = vld [vmem:[%s2 + $0xc] sm:$0xf]
    %v87 = vld [vmem:[%s3] sm:$0x1]
    %v89 = vlaneseq
    %v90 = vshrl.u32 %v89, 7
    %v91 = vsub.s32 0, %v90
    %v92 = vrot.slane %v87, %v91
    %v98 = vunpack.c.l.b16 %v83
    %v99 = vunpack.c.l.b16 %v84
    %v100 = vunpack.c.l.b16 %v85
    %v101 = vunpack.c.l.b16 %v86
    %v102 = vpack.c.b16 %v99, %v98
    %v103 = vpack.c.b16 %v101, %v100
    %vm106 = vcmask 261120
    %v108 = vsel %vm106, %v68, 0
    %v111 = vsel %vm106, %v69, 0
    %v114 = vsel %vm106, %v70, 0
    %v117 = vsel %vm106, %v71, 0
    %v120 = vsel %vm106, %v72, 0
    %v123 = vsel %vm106, %v73, 0
    %v126 = vsel %vm106, %v74, 0
    %v129 = vsel %vm106, %v75, 0
    %v132 = vsel %vm106, %v76, 0
    %v135 = vsel %vm106, %v77, 0
    %v138 = vsel %vm106, %v78, 0
    %v141 = vsel %vm106, %v79, 0
    %v144 = vsel %vm106, %v80, 0
    %146 = vmatprep.subr.bf16.mxu0 0
    %147 = vmatpush1.bf16.msra.mxu0 0
    %148 = vmatprep.subr.bf16.mxu0 0
    %149 = vmatpush1.bf16.msra.mxu0 0
    %150 = vmatprep.subr.bf16.mxu0 0
    %151 = vmatpush1.bf16.msra.mxu0 0
    %152 = vmatprep.subr.bf16.mxu0 0
    %153 = vmatpush1.bf16.msra.mxu0 0
    %154 = vmatprep.subr.bf16.mxu0 0
    %155 = vmatpush1.bf16.msra.mxu0 0
    %156 = vmatprep.subr.bf16.mxu0 0
    %157 = vmatpush1.bf16.msra.mxu0 0
    %158 = vmatprep.subr.bf16.mxu0 0
    %159 = vmatpush1.bf16.msra.mxu0 %v103
    %160 = vmatprep.subr.bf16.mxu0 0
    %161 = vmatpush1.bf16.msra.mxu0 %v102
    %162 = vmatprep.subr.bf16.mxu0 0
    %163 = vmatpush2.bf16.msra.mxu0 0
    %164 = vmatprep.subr.bf16.mxu0 0
    %165 = vmatpush2.bf16.msra.mxu0 0
    %166 = vmatprep.subr.bf16.mxu0 0
    %167 = vmatpush2.bf16.msra.mxu0 0
    %168 = vmatprep.subr.bf16.mxu0 0
    %169 = vmatpush2.bf16.msra.mxu0 0
    %170 = vmatprep.subr.bf16.mxu0 0
    %171 = vmatpush2.bf16.msra.mxu0 0
    %172 = vmatprep.subr.bf16.mxu0 0
    %173 = vmatpush2.bf16.msra.mxu0 0
    %174 = vmatprep.subr.bf16.mxu0 0
    %175 = vmatpush2.bf16.msra.mxu0 0
    %176 = vmatprep.subr.bf16.mxu0 0
    %177 = vmatpush2.bf16.msra.mxu0 0
    %178 = vmatprep.mubr.bf16.mxu0 0
    %179 = vmatmul.mubr.bf16.gmra.mxu0 %v108
    %v180 = vpop.f32.mrf.mxu0
    %v181 = vadd.f32 %v92, %v180
    %v182 = vpop.f32.mrf.mxu0
    %v183 = vpop.f32.mrf.mxu0
    %v184 = vadd.f32 %v92, %v183
    %v185 = vpop.f32.mrf.mxu0
    %186 = vmatprep.mubr.bf16.mxu0 0
    %187 = vmatmul.mubr.bf16.gmra.mxu0 %v111
    %v188 = vpop.f32.mrf.mxu0
    %v189 = vadd.f32 %v92, %v188
    %v190 = vpop.f32.mrf.mxu0
    %v191 = vpop.f32.mrf.mxu0
    %v192 = vadd.f32 %v92, %v191
    %v193 = vpop.f32.mrf.mxu0
    %194 = vmatprep.mubr.bf16.mxu0 0
    %195 = vmatmul.mubr.bf16.gmra.mxu0 %v114
    %v196 = vpop.f32.mrf.mxu0
    %v197 = vadd.f32 %v92, %v196
    %v198 = vpop.f32.mrf.mxu0
    %v199 = vpop.f32.mrf.mxu0
    %v200 = vadd.f32 %v92, %v199
    %v201 = vpop.f32.mrf.mxu0
    %202 = vmatprep.mubr.bf16.mxu0 0
    %203 = vmatmul.mubr.bf16.gmra.mxu0 %v117
    %v204 = vpop.f32.mrf.mxu0
    %v205 = vadd.f32 %v92, %v204
    %v206 = vpop.f32.mrf.mxu0
    %v207 = vpop.f32.mrf.mxu0
    %v208 = vadd.f32 %v92, %v207
    %v209 = vpop.f32.mrf.mxu0
    %210 = vmatprep.mubr.bf16.mxu0 0
    %211 = vmatmul.mubr.bf16.gmra.mxu0 %v120
    %v212 = vpop.f32.mrf.mxu0
    %v213 = vadd.f32 %v92, %v212
    %v214 = vpop.f32.mrf.mxu0
    %v215 = vpop.f32.mrf.mxu0
    %v216 = vadd.f32 %v92, %v215
    %v217 = vpop.f32.mrf.mxu0
    %218 = vmatprep.mubr.bf16.mxu0 0
    %219 = vmatmul.mubr.bf16.gmra.mxu0 %v123
    %v220 = vpop.f32.mrf.mxu0
    %v221 = vadd.f32 %v92, %v220
    %v222 = vpop.f32.mrf.mxu0
    %v223 = vpop.f32.mrf.mxu0
    %v224 = vadd.f32 %v92, %v223
    %v225 = vpop.f32.mrf.mxu0
    %226 = vmatprep.mubr.bf16.mxu0 0
    %227 = vmatmul.mubr.bf16.gmra.mxu0 %v126
    %v228 = vpop.f32.mrf.mxu0
    %v229 = vadd.f32 %v92, %v228
    %v230 = vpop.f32.mrf.mxu0
    %v231 = vpop.f32.mrf.mxu0
    %v232 = vadd.f32 %v92, %v231
    %v233 = vpop.f32.mrf.mxu0
    %234 = vmatprep.mubr.bf16.mxu0 0
    %235 = vmatmul.mubr.bf16.gmra.mxu0 %v129
    %v236 = vpop.f32.mrf.mxu0
    %v237 = vadd.f32 %v92, %v236
    %v238 = vpop.f32.mrf.mxu0
    %v239 = vpop.f32.mrf.mxu0
    %v240 = vadd.f32 %v92, %v239
    %v241 = vpop.f32.mrf.mxu0
    %242 = vmatprep.mubr.bf16.mxu0 0
    %243 = vmatmul.mubr.bf16.gmra.mxu0 %v132
    %v244 = vpop.f32.mrf.mxu0
    %v245 = vadd.f32 %v92, %v244
    %v246 = vpop.f32.mrf.mxu0
    %v247 = vpop.f32.mrf.mxu0
    %v248 = vadd.f32 %v92, %v247
    %v249 = vpop.f32.mrf.mxu0
    %250 = vmatprep.mubr.bf16.mxu0 0
    %251 = vmatmul.mubr.bf16.gmra.mxu0 %v135
    %v252 = vpop.f32.mrf.mxu0
    %v253 = vadd.f32 %v92, %v252
    %v254 = vpop.f32.mrf.mxu0
    %v255 = vpop.f32.mrf.mxu0
    %v256 = vadd.f32 %v92, %v255
    %v257 = vpop.f32.mrf.mxu0
    %258 = vmatprep.mubr.bf16.mxu0 0
    %259 = vmatmul.mubr.bf16.gmra.mxu0 %v138
    %v260 = vpop.f32.mrf.mxu0
    %v261 = vadd.f32 %v92, %v260
    %v262 = vpop.f32.mrf.mxu0
    %v263 = vpop.f32.mrf.mxu0
    %v264 = vadd.f32 %v92, %v263
    %v265 = vpop.f32.mrf.mxu0
    %266 = vmatprep.mubr.bf16.mxu0 0
    %267 = vmatmul.mubr.bf16.gmra.mxu0 %v141
    %v268 = vpop.f32.mrf.mxu0
    %v269 = vadd.f32 %v92, %v268
    %v270 = vpop.f32.mrf.mxu0
    %v271 = vpop.f32.mrf.mxu0
    %v272 = vadd.f32 %v92, %v271
    %v273 = vpop.f32.mrf.mxu0
    %274 = vmatprep.mubr.bf16.mxu0 0
    %275 = vmatmul.mubr.bf16.gmra.mxu0 %v144
    %v276 = vpop.f32.mrf.mxu0
    %v277 = vadd.f32 %v92, %v276
    %v278 = vpop.f32.mrf.mxu0
    %v279 = vpop.f32.mrf.mxu0
    %v280 = vpop.f32.mrf.mxu0
    %281 = vdwg.mxu0
    %vm282 = vcmp.ge.f32.partialorder %v181, 0.0
    %vm283 = vcmp.ge.f32.partialorder %v184, 0.0
    %vm284 = vcmp.ge.f32.partialorder %v189, 0.0
    %vm285 = vcmp.ge.f32.partialorder %v192, 0.0
    %vm286 = vcmp.ge.f32.partialorder %v197, 0.0
    %vm287 = vcmp.ge.f32.partialorder %v200, 0.0
    %vm288 = vcmp.ge.f32.partialorder %v205, 0.0
    %vm289 = vcmp.ge.f32.partialorder %v208, 0.0
    %vm290 = vcmp.ge.f32.partialorder %v213, 0.0
    %vm291 = vcmp.ge.f32.partialorder %v216, 0.0
    %vm292 = vcmp.ge.f32.partialorder %v221, 0.0
    %vm293 = vcmp.ge.f32.partialorder %v224, 0.0
    %vm294 = vcmp.ge.f32.partialorder %v229, 0.0
    %vm295 = vcmp.ge.f32.partialorder %v232, 0.0
    %vm296 = vcmp.ge.f32.partialorder %v237, 0.0
    %vm297 = vcmp.ge.f32.partialorder %v240, 0.0
    %vm298 = vcmp.ge.f32.partialorder %v245, 0.0
    %vm299 = vcmp.ge.f32.partialorder %v248, 0.0
    %vm300 = vcmp.ge.f32.partialorder %v253, 0.0
    %vm301 = vcmp.ge.f32.partialorder %v256, 0.0
    %vm302 = vcmp.ge.f32.partialorder %v261, 0.0
    %vm303 = vcmp.ge.f32.partialorder %v264, 0.0
    %vm304 = vcmp.ge.f32.partialorder %v269, 0.0
    %vm305 = vcmp.ge.f32.partialorder %v272, 0.0
    %vm306 = vcmp.ge.f32.partialorder %v277, 0.0
    %v307 = vstv %s81
    %v308 = vmul.f32 %v307, %v181
    %v309 = vmul.f32 %v307, %v184
    %v310 = vmul.f32 %v307, %v189
    %v311 = vmul.f32 %v307, %v192
    %v312 = vmul.f32 %v307, %v197
    %v313 = vmul.f32 %v307, %v200
    %v314 = vmul.f32 %v307, %v205
    %v315 = vmul.f32 %v307, %v208
    %v316 = vmul.f32 %v307, %v213
    %v317 = vmul.f32 %v307, %v216
    %v318 = vmul.f32 %v307, %v221
    %v319 = vmul.f32 %v307, %v224
    %v320 = vmul.f32 %v307, %v229
    %v321 = vmul.f32 %v307, %v232
    %v322 = vmul.f32 %v307, %v237
    %v323 = vmul.f32 %v307, %v240
    %v324 = vmul.f32 %v307, %v245
    %v325 = vmul.f32 %v307, %v248
    %v326 = vmul.f32 %v307, %v253
    %v327 = vmul.f32 %v307, %v256
    %v328 = vmul.f32 %v307, %v261
    %v329 = vmul.f32 %v307, %v264
    %v330 = vmul.f32 %v307, %v269
    %v331 = vmul.f32 %v307, %v272
    %v332 = vmul.f32 %v307, %v277
    %v333 = vsel %vm282, %v181, %v308
    %v334 = vsel %vm283, %v184, %v309
    %v335 = vsel %vm284, %v189, %v310
    %v336 = vsel %vm285, %v192, %v311
    %v337 = vsel %vm286, %v197, %v312
    %v338 = vsel %vm287, %v200, %v313
    %v339 = vsel %vm288, %v205, %v314
    %v340 = vsel %vm289, %v208, %v315
    %v341 = vsel %vm290, %v213, %v316
    %v342 = vsel %vm291, %v216, %v317
    %v343 = vsel %vm292, %v221, %v318
    %v344 = vsel %vm293, %v224, %v319
    %v345 = vsel %vm294, %v229, %v320
    %v346 = vsel %vm295, %v232, %v321
    %v347 = vsel %vm296, %v237, %v322
    %v348 = vsel %vm297, %v240, %v323
    %v349 = vsel %vm298, %v245, %v324
    %v350 = vsel %vm299, %v248, %v325
    %v351 = vsel %vm300, %v253, %v326
    %v352 = vsel %vm301, %v256, %v327
    %v353 = vsel %vm302, %v261, %v328
    %v354 = vsel %vm303, %v264, %v329
    %v355 = vsel %vm304, %v269, %v330
    %v356 = vsel %vm305, %v272, %v331
    %v357 = vsel %vm306, %v277, %v332
    %v358 = vpack.c.bf16 %v334, %v333
    %v359 = vpack.c.bf16 %v336, %v335
    %v360 = vpack.c.bf16 %v338, %v337
    %v361 = vpack.c.bf16 %v340, %v339
    %v362 = vpack.c.bf16 %v342, %v341
    %v363 = vpack.c.bf16 %v344, %v343
    %v364 = vpack.c.bf16 %v346, %v345
    %v365 = vpack.c.bf16 %v348, %v347
    %v366 = vpack.c.bf16 %v350, %v349
    %v367 = vpack.c.bf16 %v352, %v351
    %v368 = vpack.c.bf16 %v354, %v353
    %v369 = vpack.c.bf16 %v356, %v355
    %v370 = vpack.c.bf16 %v357, %v357
    %v371 = vld [vmem:[%s4] sm:$0xf]
    %v372 = vld [vmem:[%s4 + $0x4] sm:$0xf]
    %v373 = vld [vmem:[%s4 + $0x8] sm:$0xf]
    %v374 = vld [vmem:[%s4 + $0xc] sm:$0xf]
    %v375 = vld [vmem:[%s4 + $0x10] sm:$0xf]
    %v376 = vld [vmem:[%s4 + $0x14] sm:$0xf]
    %v377 = vld [vmem:[%s4 + $0x18] sm:$0xf]
    %v378 = vld [vmem:[%s4 + $0x1c] sm:$0xf]
    %v379 = vld [vmem:[%s4 + $0x20] sm:$0xf]
    %v380 = vld [vmem:[%s4 + $0x24] sm:$0xf]
    %v381 = vld [vmem:[%s4 + $0x28] sm:$0xf]
    %v382 = vld [vmem:[%s4 + $0x2c] sm:$0xf]
    %v383 = vld [vmem:[%s4 + $0x30] sm:$0xf]
    %v384 = vld [vmem:[%s4 + $0x34] sm:$0xf]
    %v385 = vld [vmem:[%s4 + $0x38] sm:$0xf]
    %v386 = vld [vmem:[%s4 + $0x3c] sm:$0xf]
    %v387 = vld [vmem:[%s5] sm:$0x1]
    %v389 = vlaneseq
    %v390 = vshrl.u32 %v389, 7
    %v391 = vsub.s32 0, %v390
    %v392 = vrot.slane %v387, %v391
    %v410 = vunpack.c.l.b16 %v371
    %v411 = vunpack.c.l.b16 %v372
    %v412 = vunpack.c.l.b16 %v373
    %v413 = vunpack.c.l.b16 %v374
    %v414 = vunpack.c.l.b16 %v375
    %v415 = vunpack.c.l.b16 %v376
    %v416 = vunpack.c.l.b16 %v377
    %v417 = vunpack.c.l.b16 %v378
    %v418 = vunpack.c.l.b16 %v379
    %v419 = vunpack.c.l.b16 %v380
    %v420 = vunpack.c.l.b16 %v381
    %v421 = vunpack.c.l.b16 %v382
    %v422 = vunpack.c.l.b16 %v383
    %v423 = vunpack.c.l.b16 %v384
    %v424 = vunpack.c.l.b16 %v385
    %v425 = vunpack.c.l.b16 %v386
    %v426 = vpack.c.b16 %v411, %v410
    %v427 = vpack.c.b16 %v413, %v412
    %v428 = vpack.c.b16 %v415, %v414
    %v429 = vpack.c.b16 %v417, %v416
    %v430 = vpack.c.b16 %v419, %v418
    %v431 = vpack.c.b16 %v421, %v420
    %v432 = vpack.c.b16 %v423, %v422
    %v433 = vpack.c.b16 %v425, %v424
    %442 = vmatprep.subr.bf16.mxu0 0
    %443 = vmatpush1.bf16.msra.mxu0 %v433
    %444 = vmatprep.subr.bf16.mxu0 0
    %445 = vmatpush1.bf16.msra.mxu0 %v432
    %446 = vmatprep.subr.bf16.mxu0 0
    %447 = vmatpush1.bf16.msra.mxu0 %v431
    %448 = vmatprep.subr.bf16.mxu0 0
    %449 = vmatpush1.bf16.msra.mxu0 %v430
    %450 = vmatprep.subr.bf16.mxu0 0
    %451 = vmatpush1.bf16.msra.mxu0 %v429
    %452 = vmatprep.subr.bf16.mxu0 0
    %453 = vmatpush1.bf16.msra.mxu0 %v428
    %454 = vmatprep.subr.bf16.mxu0 0
    %455 = vmatpush1.bf16.msra.mxu0 %v427
    %456 = vmatprep.subr.bf16.mxu0 0
    %457 = vmatpush1.bf16.msra.mxu0 %v426
    %458 = vmatprep.subr.bf16.mxu0 0
    %459 = vmatpush2.bf16.msra.mxu0 0
    %460 = vmatprep.subr.bf16.mxu0 0
    %461 = vmatpush2.bf16.msra.mxu0 0
    %462 = vmatprep.subr.bf16.mxu0 0
    %463 = vmatpush2.bf16.msra.mxu0 0
    %464 = vmatprep.subr.bf16.mxu0 0
    %465 = vmatpush2.bf16.msra.mxu0 0
    %466 = vmatprep.subr.bf16.mxu0 0
    %467 = vmatpush2.bf16.msra.mxu0 0
    %468 = vmatprep.subr.bf16.mxu0 0
    %469 = vmatpush2.bf16.msra.mxu0 0
    %470 = vmatprep.subr.bf16.mxu0 0
    %471 = vmatpush2.bf16.msra.mxu0 0
    %472 = vmatprep.subr.bf16.mxu0 0
    %473 = vmatpush2.bf16.msra.mxu0 0
    %474 = vmatprep.mubr.bf16.mxu0 0
    %475 = vmatmul.mubr.bf16.gmra.mxu0 %v358
    %v476 = vpop.f32.mrf.mxu0
    %v477 = vadd.f32 %v392, %v476
    %v478 = vpop.f32.mrf.mxu0
    %v479 = vpop.f32.mrf.mxu0
    %v480 = vadd.f32 %v392, %v479
    %v481 = vpop.f32.mrf.mxu0
    %482 = vmatprep.mubr.bf16.mxu0 0
    %483 = vmatmul.mubr.bf16.gmra.mxu0 %v359
    %v484 = vpop.f32.mrf.mxu0
    %v485 = vadd.f32 %v392, %v484
    %v486 = vpop.f32.mrf.mxu0
    %v487 = vpop.f32.mrf.mxu0
    %v488 = vadd.f32 %v392, %v487
    %v489 = vpop.f32.mrf.mxu0
    %490 = vmatprep.mubr.bf16.mxu0 0
    %491 = vmatmul.mubr.bf16.gmra.mxu0 %v360
    %v492 = vpop.f32.mrf.mxu0
    %v493 = vadd.f32 %v392, %v492
    %v494 = vpop.f32.mrf.mxu0
    %v495 = vpop.f32.mrf.mxu0
    %v496 = vadd.f32 %v392, %v495
    %v497 = vpop.f32.mrf.mxu0
    %498 = vmatprep.mubr.bf16.mxu0 0
    %499 = vmatmul.mubr.bf16.gmra.mxu0 %v361
    %v500 = vpop.f32.mrf.mxu0
    %v501 = vadd.f32 %v392, %v500
    %v502 = vpop.f32.mrf.mxu0
    %v503 = vpop.f32.mrf.mxu0
    %v504 = vadd.f32 %v392, %v503
    %v505 = vpop.f32.mrf.mxu0
    %506 = vmatprep.mubr.bf16.mxu0 0
    %507 = vmatmul.mubr.bf16.gmra.mxu0 %v362
    %v508 = vpop.f32.mrf.mxu0
    %v509 = vadd.f32 %v392, %v508
    %v510 = vpop.f32.mrf.mxu0
    %v511 = vpop.f32.mrf.mxu0
    %v512 = vadd.f32 %v392, %v511
    %v513 = vpop.f32.mrf.mxu0
    %514 = vmatprep.mubr.bf16.mxu0 0
    %515 = vmatmul.mubr.bf16.gmra.mxu0 %v363
    %v516 = vpop.f32.mrf.mxu0
    %v517 = vadd.f32 %v392, %v516
    %v518 = vpop.f32.mrf.mxu0
    %v519 = vpop.f32.mrf.mxu0
    %v520 = vadd.f32 %v392, %v519
    %v521 = vpop.f32.mrf.mxu0
    %522 = vmatprep.mubr.bf16.mxu0 0
    %523 = vmatmul.mubr.bf16.gmra.mxu0 %v364
    %v524 = vpop.f32.mrf.mxu0
    %v525 = vadd.f32 %v392, %v524
    %v526 = vpop.f32.mrf.mxu0
    %v527 = vpop.f32.mrf.mxu0
    %v528 = vadd.f32 %v392, %v527
    %v529 = vpop.f32.mrf.mxu0
    %530 = vmatprep.mubr.bf16.mxu0 0
    %531 = vmatmul.mubr.bf16.gmra.mxu0 %v365
    %v532 = vpop.f32.mrf.mxu0
    %v533 = vadd.f32 %v392, %v532
    %v534 = vpop.f32.mrf.mxu0
    %v535 = vpop.f32.mrf.mxu0
    %v536 = vadd.f32 %v392, %v535
    %v537 = vpop.f32.mrf.mxu0
    %538 = vmatprep.mubr.bf16.mxu0 0
    %539 = vmatmul.mubr.bf16.gmra.mxu0 %v366
    %v540 = vpop.f32.mrf.mxu0
    %v541 = vadd.f32 %v392, %v540
    %v542 = vpop.f32.mrf.mxu0
    %v543 = vpop.f32.mrf.mxu0
    %v544 = vadd.f32 %v392, %v543
    %v545 = vpop.f32.mrf.mxu0
    %546 = vmatprep.mubr.bf16.mxu0 0
    %547 = vmatmul.mubr.bf16.gmra.mxu0 %v367
    %v548 = vpop.f32.mrf.mxu0
    %v549 = vadd.f32 %v392, %v548
    %v550 = vpop.f32.mrf.mxu0
    %v551 = vpop.f32.mrf.mxu0
    %v552 = vadd.f32 %v392, %v551
    %v553 = vpop.f32.mrf.mxu0
    %554 = vmatprep.mubr.bf16.mxu0 0
    %555 = vmatmul.mubr.bf16.gmra.mxu0 %v368
    %v556 = vpop.f32.mrf.mxu0
    %v557 = vadd.f32 %v392, %v556
    %v558 = vpop.f32.mrf.mxu0
    %v559 = vpop.f32.mrf.mxu0
    %v560 = vadd.f32 %v392, %v559
    %v561 = vpop.f32.mrf.mxu0
    %562 = vmatprep.mubr.bf16.mxu0 0
    %563 = vmatmul.mubr.bf16.gmra.mxu0 %v369
    %v564 = vpop.f32.mrf.mxu0
    %v565 = vadd.f32 %v392, %v564
    %v566 = vpop.f32.mrf.mxu0
    %v567 = vpop.f32.mrf.mxu0
    %v568 = vadd.f32 %v392, %v567
    %v569 = vpop.f32.mrf.mxu0
    %570 = vmatprep.mubr.bf16.mxu0 0
    %571 = vmatmul.mubr.bf16.gmra.mxu0 %v370
    %v572 = vpop.f32.mrf.mxu0
    %v573 = vadd.f32 %v392, %v572
    %v574 = vpop.f32.mrf.mxu0
    %v575 = vpop.f32.mrf.mxu0
    %v576 = vpop.f32.mrf.mxu0
    %577 = vdwg.mxu0
    %vm578 = vcmp.ge.f32.partialorder %v477, 0.0
    %vm579 = vcmp.ge.f32.partialorder %v480, 0.0
    %vm580 = vcmp.ge.f32.partialorder %v485, 0.0
    %vm581 = vcmp.ge.f32.partialorder %v488, 0.0
    %vm582 = vcmp.ge.f32.partialorder %v493, 0.0
    %vm583 = vcmp.ge.f32.partialorder %v496, 0.0
    %vm584 = vcmp.ge.f32.partialorder %v501, 0.0
    %vm585 = vcmp.ge.f32.partialorder %v504, 0.0
    %vm586 = vcmp.ge.f32.partialorder %v509, 0.0
    %vm587 = vcmp.ge.f32.partialorder %v512, 0.0
    %vm588 = vcmp.ge.f32.partialorder %v517, 0.0
    %vm589 = vcmp.ge.f32.partialorder %v520, 0.0
    %vm590 = vcmp.ge.f32.partialorder %v525, 0.0
    %vm591 = vcmp.ge.f32.partialorder %v528, 0.0
    %vm592 = vcmp.ge.f32.partialorder %v533, 0.0
    %vm593 = vcmp.ge.f32.partialorder %v536, 0.0
    %vm594 = vcmp.ge.f32.partialorder %v541, 0.0
    %vm595 = vcmp.ge.f32.partialorder %v544, 0.0
    %vm596 = vcmp.ge.f32.partialorder %v549, 0.0
    %vm597 = vcmp.ge.f32.partialorder %v552, 0.0
    %vm598 = vcmp.ge.f32.partialorder %v557, 0.0
    %vm599 = vcmp.ge.f32.partialorder %v560, 0.0
    %vm600 = vcmp.ge.f32.partialorder %v565, 0.0
    %vm601 = vcmp.ge.f32.partialorder %v568, 0.0
    %vm602 = vcmp.ge.f32.partialorder %v573, 0.0
    %v603 = vstv %s82
    %v604 = vmul.f32 %v603, %v477
    %v605 = vmul.f32 %v603, %v480
    %v606 = vmul.f32 %v603, %v485
    %v607 = vmul.f32 %v603, %v488
    %v608 = vmul.f32 %v603, %v493
    %v609 = vmul.f32 %v603, %v496
    %v610 = vmul.f32 %v603, %v501
    %v611 = vmul.f32 %v603, %v504
    %v612 = vmul.f32 %v603, %v509
    %v613 = vmul.f32 %v603, %v512
    %v614 = vmul.f32 %v603, %v517
    %v615 = vmul.f32 %v603, %v520
    %v616 = vmul.f32 %v603, %v525
    %v617 = vmul.f32 %v603, %v528
    %v618 = vmul.f32 %v603, %v533
    %v619 = vmul.f32 %v603, %v536
    %v620 = vmul.f32 %v603, %v541
    %v621 = vmul.f32 %v603, %v544
    %v622 = vmul.f32 %v603, %v549
    %v623 = vmul.f32 %v603, %v552
    %v624 = vmul.f32 %v603, %v557
    %v625 = vmul.f32 %v603, %v560
    %v626 = vmul.f32 %v603, %v565
    %v627 = vmul.f32 %v603, %v568
    %v628 = vmul.f32 %v603, %v573
    %v629 = vsel %vm578, %v477, %v604
    %v630 = vsel %vm579, %v480, %v605
    %v631 = vsel %vm580, %v485, %v606
    %v632 = vsel %vm581, %v488, %v607
    %v633 = vsel %vm582, %v493, %v608
    %v634 = vsel %vm583, %v496, %v609
    %v635 = vsel %vm584, %v501, %v610
    %v636 = vsel %vm585, %v504, %v611
    %v637 = vsel %vm586, %v509, %v612
    %v638 = vsel %vm587, %v512, %v613
    %v639 = vsel %vm588, %v517, %v614
    %v640 = vsel %vm589, %v520, %v615
    %v641 = vsel %vm590, %v525, %v616
    %v642 = vsel %vm591, %v528, %v617
    %v643 = vsel %vm592, %v533, %v618
    %v644 = vsel %vm593, %v536, %v619
    %v645 = vsel %vm594, %v541, %v620
    %v646 = vsel %vm595, %v544, %v621
    %v647 = vsel %vm596, %v549, %v622
    %v648 = vsel %vm597, %v552, %v623
    %v649 = vsel %vm598, %v557, %v624
    %v650 = vsel %vm599, %v560, %v625
    %v651 = vsel %vm600, %v565, %v626
    %v652 = vsel %vm601, %v568, %v627
    %v653 = vsel %vm602, %v573, %v628
    %v654 = vpack.c.bf16 %v630, %v629
    %v655 = vpack.c.bf16 %v632, %v631
    %v656 = vpack.c.bf16 %v634, %v633
    %v657 = vpack.c.bf16 %v636, %v635
    %v658 = vpack.c.bf16 %v638, %v637
    %v659 = vpack.c.bf16 %v640, %v639
    %v660 = vpack.c.bf16 %v642, %v641
    %v661 = vpack.c.bf16 %v644, %v643
    %v662 = vpack.c.bf16 %v646, %v645
    %v663 = vpack.c.bf16 %v648, %v647
    %v664 = vpack.c.bf16 %v650, %v649
    %v665 = vpack.c.bf16 %v652, %v651
    %v666 = vpack.c.bf16 %v653, %v653
    %v667 = vld [vmem:[%s6] sm:$0xf]
    %v668 = vld [vmem:[%s6 + $0x4] sm:$0xf]
    %v669 = vld [vmem:[%s6 + $0x8] sm:$0xf]
    %v670 = vld [vmem:[%s6 + $0xc] sm:$0xf]
    %v671 = vld [vmem:[%s6 + $0x10] sm:$0xf]
    %v672 = vld [vmem:[%s6 + $0x14] sm:$0xf]
    %v673 = vld [vmem:[%s6 + $0x18] sm:$0xf]
    %v674 = vld [vmem:[%s6 + $0x1c] sm:$0xf]
    %v675 = vld [vmem:[%s6 + $0x20] sm:$0xf]
    %v676 = vld [vmem:[%s6 + $0x24] sm:$0xf]
    %v677 = vld [vmem:[%s6 + $0x28] sm:$0xf]
    %v678 = vld [vmem:[%s6 + $0x2c] sm:$0xf]
    %v679 = vld [vmem:[%s6 + $0x30] sm:$0xf]
    %v680 = vld [vmem:[%s6 + $0x34] sm:$0xf]
    %v681 = vld [vmem:[%s6 + $0x38] sm:$0xf]
    %v682 = vld [vmem:[%s6 + $0x3c] sm:$0xf]
    %v683 = vld [vmem:[%s7] sm:$0x1]
    %v685 = vlaneseq
    %v686 = vshrl.u32 %v685, 7
    %v687 = vsub.s32 0, %v686
    %v688 = vrot.slane %v683, %v687
    %v706 = vunpack.c.l.b16 %v667
    %v707 = vunpack.c.l.b16 %v668
    %v708 = vunpack.c.l.b16 %v669
    %v709 = vunpack.c.l.b16 %v670
    %v710 = vunpack.c.l.b16 %v671
    %v711 = vunpack.c.l.b16 %v672
    %v712 = vunpack.c.l.b16 %v673
    %v713 = vunpack.c.l.b16 %v674
    %v714 = vunpack.c.l.b16 %v675
    %v715 = vunpack.c.l.b16 %v676
    %v716 = vunpack.c.l.b16 %v677
    %v717 = vunpack.c.l.b16 %v678
    %v718 = vunpack.c.l.b16 %v679
    %v719 = vunpack.c.l.b16 %v680
    %v720 = vunpack.c.l.b16 %v681
    %v721 = vunpack.c.l.b16 %v682
    %v722 = vpack.c.b16 %v707, %v706
    %v723 = vpack.c.b16 %v709, %v708
    %v724 = vpack.c.b16 %v711, %v710
    %v725 = vpack.c.b16 %v713, %v712
    %v726 = vpack.c.b16 %v715, %v714
    %v727 = vpack.c.b16 %v717, %v716
    %v728 = vpack.c.b16 %v719, %v718
    %v729 = vpack.c.b16 %v721, %v720
    %738 = vmatprep.subr.bf16.mxu0 0
    %739 = vmatpush1.bf16.msra.mxu0 %v729
    %740 = vmatprep.subr.bf16.mxu0 0
    %741 = vmatpush1.bf16.msra.mxu0 %v728
    %742 = vmatprep.subr.bf16.mxu0 0
    %743 = vmatpush1.bf16.msra.mxu0 %v727
    %744 = vmatprep.subr.bf16.mxu0 0
    %745 = vmatpush1.bf16.msra.mxu0 %v726
    %746 = vmatprep.subr.bf16.mxu0 0
    %747 = vmatpush1.bf16.msra.mxu0 %v725
    %748 = vmatprep.subr.bf16.mxu0 0
    %749 = vmatpush1.bf16.msra.mxu0 %v724
    %750 = vmatprep.subr.bf16.mxu0 0
    %751 = vmatpush1.bf16.msra.mxu0 %v723
    %752 = vmatprep.subr.bf16.mxu0 0
    %753 = vmatpush1.bf16.msra.mxu0 %v722
    %754 = vmatprep.subr.bf16.mxu0 0
    %755 = vmatpush2.bf16.msra.mxu0 0
    %756 = vmatprep.subr.bf16.mxu0 0
    %757 = vmatpush2.bf16.msra.mxu0 0
    %758 = vmatprep.subr.bf16.mxu0 0
    %759 = vmatpush2.bf16.msra.mxu0 0
    %760 = vmatprep.subr.bf16.mxu0 0
    %761 = vmatpush2.bf16.msra.mxu0 0
    %762 = vmatprep.subr.bf16.mxu0 0
    %763 = vmatpush2.bf16.msra.mxu0 0
    %764 = vmatprep.subr.bf16.mxu0 0
    %765 = vmatpush2.bf16.msra.mxu0 0
    %766 = vmatprep.subr.bf16.mxu0 0
    %767 = vmatpush2.bf16.msra.mxu0 0
    %768 = vmatprep.subr.bf16.mxu0 0
    %769 = vmatpush2.bf16.msra.mxu0 0
    %770 = vmatprep.mubr.bf16.mxu0 0
    %771 = vmatmul.mubr.bf16.gmra.mxu0 %v654
    %v772 = vpop.f32.mrf.mxu0
    %v773 = vadd.f32 %v688, %v772
    %v774 = vpop.f32.mrf.mxu0
    %v775 = vpop.f32.mrf.mxu0
    %v776 = vadd.f32 %v688, %v775
    %v777 = vpop.f32.mrf.mxu0
    %778 = vmatprep.mubr.bf16.mxu0 0
    %779 = vmatmul.mubr.bf16.gmra.mxu0 %v655
    %v780 = vpop.f32.mrf.mxu0
    %v781 = vadd.f32 %v688, %v780
    %v782 = vpop.f32.mrf.mxu0
    %v783 = vpop.f32.mrf.mxu0
    %v784 = vadd.f32 %v688, %v783
    %v785 = vpop.f32.mrf.mxu0
    %786 = vmatprep.mubr.bf16.mxu0 0
    %787 = vmatmul.mubr.bf16.gmra.mxu0 %v656
    %v788 = vpop.f32.mrf.mxu0
    %v789 = vadd.f32 %v688, %v788
    %v790 = vpop.f32.mrf.mxu0
    %v791 = vpop.f32.mrf.mxu0
    %v792 = vadd.f32 %v688, %v791
    %v793 = vpop.f32.mrf.mxu0
    %794 = vmatprep.mubr.bf16.mxu0 0
    %795 = vmatmul.mubr.bf16.gmra.mxu0 %v657
    %v796 = vpop.f32.mrf.mxu0
    %v797 = vadd.f32 %v688, %v796
    %v798 = vpop.f32.mrf.mxu0
    %v799 = vpop.f32.mrf.mxu0
    %v800 = vadd.f32 %v688, %v799
    %v801 = vpop.f32.mrf.mxu0
    %802 = vmatprep.mubr.bf16.mxu0 0
    %803 = vmatmul.mubr.bf16.gmra.mxu0 %v658
    %v804 = vpop.f32.mrf.mxu0
    %v805 = vadd.f32 %v688, %v804
    %v806 = vpop.f32.mrf.mxu0
    %v807 = vpop.f32.mrf.mxu0
    %v808 = vadd.f32 %v688, %v807
    %v809 = vpop.f32.mrf.mxu0
    %810 = vmatprep.mubr.bf16.mxu0 0
    %811 = vmatmul.mubr.bf16.gmra.mxu0 %v659
    %v812 = vpop.f32.mrf.mxu0
    %v813 = vadd.f32 %v688, %v812
    %v814 = vpop.f32.mrf.mxu0
    %v815 = vpop.f32.mrf.mxu0
    %v816 = vadd.f32 %v688, %v815
    %v817 = vpop.f32.mrf.mxu0
    %818 = vmatprep.mubr.bf16.mxu0 0
    %819 = vmatmul.mubr.bf16.gmra.mxu0 %v660
    %v820 = vpop.f32.mrf.mxu0
    %v821 = vadd.f32 %v688, %v820
    %v822 = vpop.f32.mrf.mxu0
    %v823 = vpop.f32.mrf.mxu0
    %v824 = vadd.f32 %v688, %v823
    %v825 = vpop.f32.mrf.mxu0
    %826 = vmatprep.mubr.bf16.mxu0 0
    %827 = vmatmul.mubr.bf16.gmra.mxu0 %v661
    %v828 = vpop.f32.mrf.mxu0
    %v829 = vadd.f32 %v688, %v828
    %v830 = vpop.f32.mrf.mxu0
    %v831 = vpop.f32.mrf.mxu0
    %v832 = vadd.f32 %v688, %v831
    %v833 = vpop.f32.mrf.mxu0
    %834 = vmatprep.mubr.bf16.mxu0 0
    %835 = vmatmul.mubr.bf16.gmra.mxu0 %v662
    %v836 = vpop.f32.mrf.mxu0
    %v837 = vadd.f32 %v688, %v836
    %v838 = vpop.f32.mrf.mxu0
    %v839 = vpop.f32.mrf.mxu0
    %v840 = vadd.f32 %v688, %v839
    %v841 = vpop.f32.mrf.mxu0
    %842 = vmatprep.mubr.bf16.mxu0 0
    %843 = vmatmul.mubr.bf16.gmra.mxu0 %v663
    %v844 = vpop.f32.mrf.mxu0
    %v845 = vadd.f32 %v688, %v844
    %v846 = vpop.f32.mrf.mxu0
    %v847 = vpop.f32.mrf.mxu0
    %v848 = vadd.f32 %v688, %v847
    %v849 = vpop.f32.mrf.mxu0
    %850 = vmatprep.mubr.bf16.mxu0 0
    %851 = vmatmul.mubr.bf16.gmra.mxu0 %v664
    %v852 = vpop.f32.mrf.mxu0
    %v853 = vadd.f32 %v688, %v852
    %v854 = vpop.f32.mrf.mxu0
    %v855 = vpop.f32.mrf.mxu0
    %v856 = vadd.f32 %v688, %v855
    %v857 = vpop.f32.mrf.mxu0
    %858 = vmatprep.mubr.bf16.mxu0 0
    %859 = vmatmul.mubr.bf16.gmra.mxu0 %v665
    %v860 = vpop.f32.mrf.mxu0
    %v861 = vadd.f32 %v688, %v860
    %v862 = vpop.f32.mrf.mxu0
    %v863 = vpop.f32.mrf.mxu0
    %v864 = vadd.f32 %v688, %v863
    %v865 = vpop.f32.mrf.mxu0
    %866 = vmatprep.mubr.bf16.mxu0 0
    %867 = vmatmul.mubr.bf16.gmra.mxu0 %v666
    %v868 = vpop.f32.mrf.mxu0
    %v869 = vadd.f32 %v688, %v868
    %v870 = vpop.f32.mrf.mxu0
    %v871 = vpop.f32.mrf.mxu0
    %v872 = vpop.f32.mrf.mxu0
    %873 = vdwg.mxu0
    %vm874 = vcmask 7168
    %875 = vst.msk [vmem:[%s8] sm:$0xff] %vm874, %v773
    %876 = vst.msk [vmem:[%s8 + $0x8] sm:$0xff] %vm874, %v776
    %877 = vst.msk [vmem:[%s8 + $0x10] sm:$0xff] %vm874, %v781
    %878 = vst.msk [vmem:[%s8 + $0x18] sm:$0xff] %vm874, %v784
    %879 = vst.msk [vmem:[%s8 + $0x20] sm:$0xff] %vm874, %v789
    %880 = vst.msk [vmem:[%s8 + $0x28] sm:$0xff] %vm874, %v792
    %881 = vst.msk [vmem:[%s8 + $0x30] sm:$0xff] %vm874, %v797
    %882 = vst.msk [vmem:[%s8 + $0x38] sm:$0xff] %vm874, %v800
    %883 = vst.msk [vmem:[%s8 + $0x40] sm:$0xff] %vm874, %v805
    %884 = vst.msk [vmem:[%s8 + $0x48] sm:$0xff] %vm874, %v808
    %885 = vst.msk [vmem:[%s8 + $0x50] sm:$0xff] %vm874, %v813
    %886 = vst.msk [vmem:[%s8 + $0x58] sm:$0xff] %vm874, %v816
    %887 = vst.msk [vmem:[%s8 + $0x60] sm:$0xff] %vm874, %v821
    %888 = vst.msk [vmem:[%s8 + $0x68] sm:$0xff] %vm874, %v824
    %889 = vst.msk [vmem:[%s8 + $0x70] sm:$0xff] %vm874, %v829
    %890 = vst.msk [vmem:[%s8 + $0x78] sm:$0xff] %vm874, %v832
    %891 = vst.msk [vmem:[%s8 + $0x80] sm:$0xff] %vm874, %v837
    %892 = vst.msk [vmem:[%s8 + $0x88] sm:$0xff] %vm874, %v840
    %893 = vst.msk [vmem:[%s8 + $0x90] sm:$0xff] %vm874, %v845
    %894 = vst.msk [vmem:[%s8 + $0x98] sm:$0xff] %vm874, %v848
    %895 = vst.msk [vmem:[%s8 + $0xa0] sm:$0xff] %vm874, %v853
    %896 = vst.msk [vmem:[%s8 + $0xa8] sm:$0xff] %vm874, %v856
    %897 = vst.msk [vmem:[%s8 + $0xb0] sm:$0xff] %vm874, %v861
    %898 = vst.msk [vmem:[%s8 + $0xb8] sm:$0xff] %vm874, %v864
    %899 = vst.msk [vmem:[%s8 + $0xc0] sm:$0xff] %vm874, %v869
    // Predicated region
    $region38: #{tpu_custom_call.1} parent=1 // pred_check
      _
    $region39: #{tpu_custom_call.1} parent=1 // pred_check_branch
      %901 = sbr.rel (0) target = $region41
    $region40: #{tpu_custom_call.1} parent=1 // pred_region
      _
    $region41: #{tpu_custom_call.1} parent=1 // pred_fallthru
      _
    // Predicated region
    $region42: #{tpu_custom_call.1} parent=1 // pred_check
      _
    $region43: #{tpu_custom_call.1} parent=1 // pred_check_branch
      %903 = sbr.rel (0) target = $region45
    $region44: #{tpu_custom_call.1} parent=1 // pred_region
      _
    $region45: #{tpu_custom_call.1} parent=1 // pred_fallthru
      _
    %904 = vsyncpa [#allocation3], 1

</llo_original>
